<compile_context>
chip_gen: v5e
topology: v5e:2x2
jax: 0.10.0
libtpu: 0.0.40
codegen_flags: <defaults>
</compile_context>

<pallas_src>
import functools

import jax
import jax.numpy as jnp
from jax.experimental import pallas as pl
from jax.experimental.pallas import tpu as pltpu

LANE = 128
SUBLANE = 8


def _round_up(n, m):
    return ((n + m - 1) // m) * m


def mlp_text_kernel(x_ref, w1_ref, b1_ref, w2_ref, b2_ref, o_ref):
    # In-kernel f32 -> bf16 cast of the activations (free under the MXU/DMA);
    # avoids a separate XLA pass + an extra HBM round trip of x in the wrapper.
    x = x_ref[...].astype(jnp.bfloat16)
    # fc1: bf16 operands on the MXU, f32 accumulation.
    h = jnp.dot(x, w1_ref[...], preferred_element_type=jnp.float32)
    # Bias add + ReLU in f32 (keep the elementwise epilogue f32 for v5e).
    h = jnp.maximum(h + b1_ref[...], 0.0)
    # fc2: cast hidden activations to bf16 for the MXU, accumulate in f32.
    out = jnp.dot(h.astype(jnp.bfloat16), w2_ref[...],
                  preferred_element_type=jnp.float32)
    o_ref[...] = (out + b2_ref[...]).astype(o_ref.dtype)


def prepare_params(w1, b1, w2, b2):
    """One-time parameter layout prep (NOT on the per-call forward path).

    w1: (H, D_in), b1: (H,), w2: (C, H), b2: (C,)  -- PyTorch nn.Linear layout.
    Returns (w1_t, b1_r, w2_t, b2_r): weights transposed to (in, out), cast to
    bf16, fc2 output dim zero-padded to a multiple of 128 (so padded logits are
    exactly zero and the wrapper slice is correct).
    """
    H, D_in = w1.shape
    C = w2.shape[0]
    c_pad = _round_up(C, LANE)

    w1_t = jnp.transpose(w1).astype(jnp.bfloat16)                       # (D_in, H)
    w2_t = jnp.zeros((H, c_pad), jnp.bfloat16)
    w2_t = w2_t.at[:, :C].set(jnp.transpose(w2).astype(jnp.bfloat16))   # (H, C_pad)
    b1_r = b1.reshape(1, H).astype(jnp.float32)                         # (1, H)
    b2_r = jnp.zeros((1, c_pad), jnp.float32).at[:, :C].set(b2.astype(jnp.float32))
    return w1_t, b1_r, w2_t, b2_r


@functools.partial(jax.jit,
                   static_argnames=("num_classes", "block_b", "min_batch_tiles"))
def mlp_text_forward(x, w1_t, b1_r, w2_t, b2_r, *, num_classes,
                     block_b=512, min_batch_tiles=1):
    """x: (B, D_in) float32; params from prepare_params(); returns (B, num_classes) f32.

    block_b: max batch rows per grid step (512 is a good default on v5e/v6e).
    min_batch_tiles: set to 2 on v7x so the 'parallel' batch axis actually
    splits across both TensorCores when B is large enough.
    """
    B, D_in = x.shape
    H = w1_t.shape[1]
    c_pad = w2_t.shape[1]

    # Balanced batch tiling: minimal padding per tile, at least `min_batch_tiles`
    # grid steps (when B is large enough to split at sublane granularity).
    n_tiles = max(pl.cdiv(B, block_b), min_batch_tiles)
    tb = min(_round_up(pl.cdiv(B, n_tiles), SUBLANE), _round_up(B, SUBLANE))
    n_tiles = pl.cdiv(B, tb)

    # No jnp.pad / no wrapper-side cast: x goes straight into the kernel as f32;
    # Pallas masks the ragged last block's output stores, so out stays (B, c_pad).
    out = pl.pallas_call(
        mlp_text_kernel,
        out_shape=jax.ShapeDtypeStruct((B, c_pad), jnp.float32),
        grid=(n_tiles,),
        in_specs=[
            pl.BlockSpec((tb, D_in), lambda i: (i, 0)),   # x: streamed over batch (f32)
            pl.BlockSpec((D_in, H), lambda i: (0, 0)),    # w1: VMEM-resident across grid
            pl.BlockSpec((1, H), lambda i: (0, 0)),       # b1: resident
            pl.BlockSpec((H, c_pad), lambda i: (0, 0)),   # w2: resident
            pl.BlockSpec((1, c_pad), lambda i: (0, 0)),   # b2: resident
        ],
        out_specs=pl.BlockSpec((tb, c_pad), lambda i: (i, 0)),
        compiler_params=pltpu.CompilerParams(
            # Batch axis is independent -> shard across v7x's two TensorCores.
            dimension_semantics=("parallel",),
        ),
    )(x, w1_t, b1_r, w2_t, b2_r)

    return out[:, :num_classes]


def reference_forward(x, w1, b1, w2, b2):
    h = jnp.maximum(x @ w1.T + b1, 0.0)
    return h @ w2.T + b2


if __name__ == "__main__":
    # Module shapes: input_dim=768, hidden_dim=256, num_classes=3 (small batch).
    B, D_in, H, C = 8, 768, 256, 3

    key = jax.random.PRNGKey(0)
    kx, kw1, kb1, kw2, kb2 = jax.random.split(key, 5)

    x = jax.random.normal(kx, (B, D_in), dtype=jnp.float32)
    # Deterministic "init" mimicking nn.Linear uniform(-1/sqrt(fan_in), 1/sqrt(fan_in))
    lim1 = 1.0 / jnp.sqrt(jnp.float32(D_in))
    lim2 = 1.0 / jnp.sqrt(jnp.float32(H))
    w1 = jax.random.uniform(kw1, (H, D_in), minval=-lim1, maxval=lim1, dtype=jnp.float32)
    b1 = jax.random.uniform(kb1, (H,), minval=-lim1, maxval=lim1, dtype=jnp.float32)
    w2 = jax.random.uniform(kw2, (C, H), minval=-lim2, maxval=lim2, dtype=jnp.float32)
    b2 = jax.random.uniform(kb2, (C,), minval=-lim2, maxval=lim2, dtype=jnp.float32)

    # One-time layout prep (transpose, bf16 cast, lane-pad), off the forward path.
    w1_t, b1_r, w2_t, b2_r = prepare_params(w1, b1, w2, b2)

    out = mlp_text_forward(x, w1_t, b1_r, w2_t, b2_r, num_classes=C)
    out = jax.block_until_ready(out)

    ref = reference_forward(x, w1, b1, w2, b2)
    assert out.shape == (B, C)
    # bf16 weights/activations (f32 accumulation) vs the f32 reference -> loose tol.
    assert jnp.allclose(out, ref, atol=5e-2, rtol=5e-2), float(jnp.max(jnp.abs(out - ref)))

    print("KERNEL_OK")
</pallas_src>

<mosaic_0001>
module attributes {stable_mosaic.version = 11 : i64} {
  func.func @mlp_text_kernel(%arg0: i32, %arg1: memref<8x768xf32, #tpu.memory_space<vmem>>, %arg2: memref<768x256xbf16, #tpu.memory_space<vmem>>, %arg3: memref<1x256xf32, #tpu.memory_space<vmem>>, %arg4: memref<256x128xbf16, #tpu.memory_space<vmem>>, %arg5: memref<1x128xf32, #tpu.memory_space<vmem>>, %arg6: memref<8x128xf32, #tpu.memory_space<vmem>>) attributes {dimension_semantics = [#tpu.dimension_semantics<parallel>], iteration_bounds = array<i64: 1>, scalar_prefetch = 0 : i64, scratch_operands = 0 : i64, tpu.core_type = #tpu.core_type<tc>, window_params = [{transform_indices = @transform_0, window_bounds = array<i64: 8, 768>}, {pipeline_mode = #tpu.pipeline_mode<synchronous>, transform_indices = @transform_1, window_bounds = array<i64: 768, 256>}, {pipeline_mode = #tpu.pipeline_mode<synchronous>, transform_indices = @transform_2, window_bounds = array<i64: 1, 256>}, {pipeline_mode = #tpu.pipeline_mode<synchronous>, transform_indices = @transform_3, window_bounds = array<i64: 256, 128>}, {pipeline_mode = #tpu.pipeline_mode<synchronous>, transform_indices = @transform_4, window_bounds = array<i64: 1, 128>}, {transform_indices = @transform_5, window_bounds = array<i64: 8, 128>}]} {
    %c0 = arith.constant 0 : index
    %c0_0 = arith.constant 0 : index
    %0 = vector.load %arg1[%c0, %c0_0] : memref<8x768xf32, #tpu.memory_space<vmem>>, vector<8x768xf32>
    %1 = arith.truncf %0 : vector<8x768xf32> to vector<8x768xbf16>
    %c0_1 = arith.constant 0 : index
    %c0_2 = arith.constant 0 : index
    %2 = vector.load %arg2[%c0_1, %c0_2] : memref<768x256xbf16, #tpu.memory_space<vmem>>, vector<768x256xbf16>
    %cst = arith.constant dense<0.000000e+00> : vector<8x256xf32>
    %3 = tpu.matmul %1, %2, %cst {dimension_numbers = #tpu.dot_dimension_numbers<[1], [0], [0], [1], [0, 0, 1, 1], [], []>} : vector<8x768xbf16>, vector<768x256xbf16>, vector<8x256xf32> -> vector<8x256xf32>
    %c0_3 = arith.constant 0 : index
    %c0_4 = arith.constant 0 : index
    %4 = vector.load %arg3[%c0_3, %c0_4] : memref<1x256xf32, #tpu.memory_space<vmem>>, vector<1x256xf32>
    %5 = vector.broadcast %4 : vector<1x256xf32> to vector<8x256xf32>
    %6 = arith.addf %3, %5 : vector<8x256xf32>
    %cst_5 = arith.constant 0.000000e+00 : f32
    %7 = vector.broadcast %cst_5 : f32 to vector<8x256xf32>
    %8 = arith.maximumf %6, %7 : vector<8x256xf32>
    %9 = arith.truncf %8 : vector<8x256xf32> to vector<8x256xbf16>
    %c0_6 = arith.constant 0 : index
    %c0_7 = arith.constant 0 : index
    %10 = vector.load %arg4[%c0_6, %c0_7] : memref<256x128xbf16, #tpu.memory_space<vmem>>, vector<256x128xbf16>
    %cst_8 = arith.constant dense<0.000000e+00> : vector<8x128xf32>
    %11 = tpu.matmul %9, %10, %cst_8 {dimension_numbers = #tpu.dot_dimension_numbers<[1], [0], [0], [1], [0, 0, 1, 1], [], []>} : vector<8x256xbf16>, vector<256x128xbf16>, vector<8x128xf32> -> vector<8x128xf32>
    %c0_9 = arith.constant 0 : index
    %c0_10 = arith.constant 0 : index
    %12 = vector.load %arg5[%c0_9, %c0_10] : memref<1x128xf32, #tpu.memory_space<vmem>>, vector<1x128xf32>
    %13 = vector.broadcast %12 : vector<1x128xf32> to vector<8x128xf32>
    %14 = arith.addf %11, %13 : vector<8x128xf32>
    %c0_11 = arith.constant 0 : index
    %c0_12 = arith.constant 0 : index
    %15 = vector.load %arg6[%c0_11, %c0_12] : memref<8x128xf32, #tpu.memory_space<vmem>>, vector<8x128xf32>
    tpu.vector_store %arg6[%c0_11, %c0_12], %14 {strides = array<i32>} : memref<8x128xf32, #tpu.memory_space<vmem>>, vector<8x128xf32>,
    return
  }
  func.func @transform_0(%arg0: i32) -> (i32, i32) {
    %c0_i32 = arith.constant 0 : i32
    %c0_i32_0 = arith.constant 0 : i32
    return %arg0, %c0_i32 : i32, i32
  }
  func.func @transform_1(%arg0: i32) -> (i32, i32) {
    %c0_i32 = arith.constant 0 : i32
    %c0_i32_0 = arith.constant 0 : i32
    %c0_i32_1 = arith.constant 0 : i32
    return %c0_i32, %c0_i32_0 : i32, i32
  }
  func.func @transform_2(%arg0: i32) -> (i32, i32) {
    %c0_i32 = arith.constant 0 : i32
    %c0_i32_0 = arith.constant 0 : i32
    %c0_i32_1 = arith.constant 0 : i32
    return %c0_i32, %c0_i32_0 : i32, i32
  }
  func.func @transform_3(%arg0: i32) -> (i32, i32) {
    %c0_i32 = arith.constant 0 : i32
    %c0_i32_0 = arith.constant 0 : i32
    %c0_i32_1 = arith.constant 0 : i32
    return %c0_i32, %c0_i32_0 : i32, i32
  }
  func.func @transform_4(%arg0: i32) -> (i32, i32) {
    %c0_i32 = arith.constant 0 : i32
    %c0_i32_0 = arith.constant 0 : i32
    %c0_i32_1 = arith.constant 0 : i32
    return %c0_i32, %c0_i32_0 : i32, i32
  }
  func.func @transform_5(%arg0: i32) -> (i32, i32) {
    %c0_i32 = arith.constant 0 : i32
    %c0_i32_0 = arith.constant 0 : i32
    return %arg0, %c0_i32 : i32, i32
  }
}

</mosaic_0001>

<llo_original>
// kernel: mlp_text_forward.1
$region0: #{mlp_text_forward.1}
  #allocation0 [shape = 'u32[]', space=smem, size = 0x4, offset = 0x4, fixed_abs, tag = 'smem constant byte address 0x4 - core index']
  #allocation1 [shape = 'u32[72,128]{1,0:T(1,128)}', space=vmem, size = 0x9000, scoped, tag = 'internal scratch']
  %s0 = inlined_call_operand.hbm [shape: f32[8,768], index: 0, kind: input, shape index: {}]
  %s1 = inlined_call_operand.hbm [shape: bf16[768,256], index: 1, kind: input, shape index: {}]
  %s2 = inlined_call_operand.hbm [shape: f32[1,256], index: 2, kind: input, shape index: {}]
  %s3 = inlined_call_operand.hbm [shape: bf16[256,128], index: 3, kind: input, shape index: {}]
  %s4 = inlined_call_operand.vmem [shape: f32[1,128], index: 4, kind: input, shape index: {}]
  %s5 = inlined_call_operand.vmem [shape: f32[8,128], index: 5, kind: output, shape index: {}]
  %s6 = sld [smem:[#allocation0]]
  $region46: #{mlp_text_forward.1} parent=0
    _
  %s8 = ssub.s32 1, %s6
  %s9 = scalar_select 0, %s8, %s6
  $region1: #{mlp_text_forward.1} parent=0
    #allocation2 [shape = 'u8[24576]{0}', space=vmem, size = 0x6000, scoped, tag = 'input window, operand 0, single buffered']
    #allocation3 [shape = 's32[1]{0}', space=sflag, size = 0x4, scoped, tag = 'scoped memory for mlp_text_forward.1']
    #allocation4 [shape = 'u8[393216]{0}', space=vmem, size = 0x60000, scoped, tag = 'input window, operand 1, single buffered']
    #allocation5 [shape = 's32[1]{0}', space=sflag, size = 0x4, scoped, tag = 'scoped memory for mlp_text_forward.1']
    #allocation6 [shape = 'u8[1024]{0}', space=vmem, size = 0x400, scoped, tag = 'input window, operand 2, single buffered']
    #allocation7 [shape = 'u8[65536]{0}', space=vmem, size = 0x10000, scoped, tag = 'input window, operand 3, single buffered']
    #allocation8 [shape = 's32[1]{0}', space=sflag, size = 0x4, scoped, tag = 'scoped memory for mlp_text_forward.1']
    %10 = vsyncpa [#allocation3], 0
    %11 = vsyncpa [#allocation5], 0
    %12 = vsyncpa [#allocation8], 0
    // Predicated region
    $region2: #{mlp_text_forward.1} parent=1 // pred_check
      _
    $region3: #{mlp_text_forward.1} parent=1 // pred_check_branch
      %14 = sbr.rel (0) target = $region5
    $region4: #{mlp_text_forward.1} parent=1 // pred_region
      %16 = vsyncadd [#allocation3], 0
      %s18 = sshll.u32 %s0, 4
      %s19 = int_to_ptr.hbm [resolvable:$true] %s18
      %s20 = sshll.u32 [#allocation2], 4
      %s21 = int_to_ptr.vmem [resolvable:$true] %s20
      %23 = dma.hbm_to_vmem [thread:$0]  %s19, 768, %s21, [#allocation3]
    $region5: #{mlp_text_forward.1} parent=1 // pred_fallthru
      _
    // Predicated region
    $region6: #{mlp_text_forward.1} parent=1 // pred_check
      _
    $region7: #{mlp_text_forward.1} parent=1 // pred_check_branch
      %25 = sbr.rel (0) target = $region9
    $region8: #{mlp_text_forward.1} parent=1 // pred_region
      %27 = vsyncadd [#allocation5], 0
      %s28 = sshll.u32 %s1, 4
      %s29 = int_to_ptr.hbm [resolvable:$true] %s28
      %s30 = sshll.u32 [#allocation4], 4
      %s31 = int_to_ptr.vmem [resolvable:$true] %s30
      %36 = dma.hbm_to_vmem [thread:$0]  %s29, 12288, %s31, [#allocation5], 128, 128, 8
    $region9: #{mlp_text_forward.1} parent=1 // pred_fallthru
      _
    // Predicated region
    $region10: #{mlp_text_forward.1} parent=1 // pred_check
      _
    $region11: #{mlp_text_forward.1} parent=1 // pred_check_branch
      %38 = sbr.rel (0) target = $region13
    $region12: #{mlp_text_forward.1} parent=1 // pred_region
      %40 = vsyncadd [#allocation5], 0
      %s42 = sshll.u32 %s2, 4
      %s43 = int_to_ptr.hbm [resolvable:$true] %s42
      %s44 = sshll.u32 [#allocation6], 4
      %s45 = int_to_ptr.vmem [resolvable:$true] %s44
      %47 = dma.hbm_to_vmem [thread:$0]  %s43, 32, %s45, [#allocation5]
    $region13: #{mlp_text_forward.1} parent=1 // pred_fallthru
      _
    // Predicated region
    $region14: #{mlp_text_forward.1} parent=1 // pred_check
      _
    $region15: #{mlp_text_forward.1} parent=1 // pred_check_branch
      %49 = sbr.rel (0) target = $region17
    $region16: #{mlp_text_forward.1} parent=1 // pred_region
      %51 = vsyncadd [#allocation8], 0
      %s52 = sshll.u32 %s3, 4
      %s53 = int_to_ptr.hbm [resolvable:$true] %s52
      %s54 = sshll.u32 [#allocation7], 4
      %s55 = int_to_ptr.vmem [resolvable:$true] %s54
      %60 = dma.hbm_to_vmem [thread:$0]  %s53, 2048, %s55, [#allocation8], 64, 64, 4
    $region17: #{mlp_text_forward.1} parent=1 // pred_fallthru
      _
    // Predicated region
    $region18: #{mlp_text_forward.1} parent=1 // pred_check
      _
    $region19: #{mlp_text_forward.1} parent=1 // pred_check_branch
      %62 = sbr.rel (0) target = $region21
    $region20: #{mlp_text_forward.1} parent=1 // pred_region
      _
    $region21: #{mlp_text_forward.1} parent=1 // pred_fallthru
      _
    // Predicated region
    $region22: #{mlp_text_forward.1} parent=1 // pred_check
      _
    $region23: #{mlp_text_forward.1} parent=1 // pred_check_branch
      %64 = sbr.rel (0) target = $region25
    $region24: #{mlp_text_forward.1} parent=1 // pred_region
      %66 = dma.done [#allocation3], 768
    $region25: #{mlp_text_forward.1} parent=1 // pred_fallthru
      _
    // Predicated region
    $region26: #{mlp_text_forward.1} parent=1 // pred_check
      _
    $region27: #{mlp_text_forward.1} parent=1 // pred_check_branch
      %68 = sbr.rel (0) target = $region29
    $region28: #{mlp_text_forward.1} parent=1 // pred_region
      %70 = dma.done [#allocation5], 12288
    $region29: #{mlp_text_forward.1} parent=1 // pred_fallthru
      _
    // Predicated region
    $region30: #{mlp_text_forward.1} parent=1 // pred_check
      _
    $region31: #{mlp_text_forward.1} parent=1 // pred_check_branch
      %72 = sbr.rel (0) target = $region33
    $region32: #{mlp_text_forward.1} parent=1 // pred_region
      %74 = dma.done [#allocation5], 32
    $region33: #{mlp_text_forward.1} parent=1 // pred_fallthru
      _
    // Predicated region
    $region34: #{mlp_text_forward.1} parent=1 // pred_check
      _
    $region35: #{mlp_text_forward.1} parent=1 // pred_check_branch
      %76 = sbr.rel (0) target = $region37
    $region36: #{mlp_text_forward.1} parent=1 // pred_region
      %78 = dma.done [#allocation8], 2048
    $region37: #{mlp_text_forward.1} parent=1 // pred_fallthru
      _
    %v79 = vld [vmem:[#allocation2] sm:$0xff]
    %v80 = vld [vmem:[#allocation2 + $0x8] sm:$0xff]
    %v81 = vld [vmem:[#allocation2 + $0x10] sm:$0xff]
    %v82 = vld [vmem:[#allocation2 + $0x18] sm:$0xff]
    %v83 = vld [vmem:[#allocation2 + $0x20] sm:$0xff]
    %v84 = vld [vmem:[#allocation2 + $0x28] sm:$0xff]
    %v85 = vpack.c.bf16 %v79, %v79
    %v86 = vpack.c.bf16 %v80, %v80
    %v87 = vpack.c.bf16 %v81, %v81
    %v88 = vpack.c.bf16 %v82, %v82
    %v89 = vpack.c.bf16 %v83, %v83
    %v90 = vpack.c.bf16 %v84, %v84
    %v91 = vld [vmem:[#allocation4] sm:$0xff]
    %v92 = vld [vmem:[#allocation4 + $0x8] sm:$0xff]
    %v93 = vld [vmem:[#allocation4 + $0x10] sm:$0xff]
    %v94 = vld [vmem:[#allocation4 + $0x18] sm:$0xff]
    %v95 = vld [vmem:[#allocation4 + $0x20] sm:$0xff]
    %v96 = vld [vmem:[#allocation4 + $0x28] sm:$0xff]
    %v97 = vld [vmem:[#allocation4 + $0x30] sm:$0xff]
    %v98 = vld [vmem:[#allocation4 + $0x38] sm:$0xff]
    %v99 = vld [vmem:[#allocation4 + $0x40] sm:$0xff]
    %v100 = vld [vmem:[#allocation4 + $0x48] sm:$0xff]
    %v101 = vld [vmem:[#allocation4 + $0x50] sm:$0xff]
    %v102 = vld [vmem:[#allocation4 + $0x58] sm:$0xff]
    %v103 = vld [vmem:[#allocation4 + $0x60] sm:$0xff]
    %v104 = vld [vmem:[#allocation4 + $0x68] sm:$0xff]
    %v105 = vld [vmem:[#allocation4 + $0x70] sm:$0xff]
    %v106 = vld [vmem:[#allocation4 + $0x78] sm:$0xff]
    %v107 = vld [vmem:[#allocation4 + $0x80] sm:$0xff]
    %v108 = vld [vmem:[#allocation4 + $0x88] sm:$0xff]
    %v109 = vld [vmem:[#allocation4 + $0x90] sm:$0xff]
    %v110 = vld [vmem:[#allocation4 + $0x98] sm:$0xff]
    %v111 = vld [vmem:[#allocation4 + $0xa0] sm:$0xff]
    %v112 = vld [vmem:[#allocation4 + $0xa8] sm:$0xff]
    %v113 = vld [vmem:[#allocation4 + $0xb0] sm:$0xff]
    %v114 = vld [vmem:[#allocation4 + $0xb8] sm:$0xff]
    %v115 = vld [vmem:[#allocation4 + $0xc0] sm:$0xff]
    %v116 = vld [vmem:[#allocation4 + $0xc8] sm:$0xff]
    %v117 = vld [vmem:[#allocation4 + $0xd0] sm:$0xff]
    %v118 = vld [vmem:[#allocation4 + $0xd8] sm:$0xff]
    %v119 = vld [vmem:[#allocation4 + $0xe0] sm:$0xff]
    %v120 = vld [vmem:[#allocation4 + $0xe8] sm:$0xff]
    %v121 = vld [vmem:[#allocation4 + $0xf0] sm:$0xff]
    %v122 = vld [vmem:[#allocation4 + $0xf8] sm:$0xff]
    %v123 = vld [vmem:[#allocation4 + $0x100] sm:$0xff]
    %v124 = vld [vmem:[#allocation4 + $0x108] sm:$0xff]
    %v125 = vld [vmem:[#allocation4 + $0x110] sm:$0xff]
    %v126 = vld [vmem:[#allocation4 + $0x118] sm:$0xff]
    %v127 = vld [vmem:[#allocation4 + $0x120] sm:$0xff]
    %v128 = vld [vmem:[#allocation4 + $0x128] sm:$0xff]
    %v129 = vld [vmem:[#allocation4 + $0x130] sm:$0xff]
    %v130 = vld [vmem:[#allocation4 + $0x138] sm:$0xff]
    %v131 = vld [vmem:[#allocation4 + $0x140] sm:$0xff]
    %v132 = vld [vmem:[#allocation4 + $0x148] sm:$0xff]
    %v133 = vld [vmem:[#allocation4 + $0x150] sm:$0xff]
    %v134 = vld [vmem:[#allocation4 + $0x158] sm:$0xff]
    %v135 = vld [vmem:[#allocation4 + $0x160] sm:$0xff]
    %v136 = vld [vmem:[#allocation4 + $0x168] sm:$0xff]
    %v137 = vld [vmem:[#allocation4 + $0x170] sm:$0xff]
    %v138 = vld [vmem:[#allocation4 + $0x178] sm:$0xff]
    %v139 = vld [vmem:[#allocation4 + $0x180] sm:$0xff]
    %v140 = vld [vmem:[#allocation4 + $0x188] sm:$0xff]
    %v141 = vld [vmem:[#allocation4 + $0x190] sm:$0xff]
    %v142 = vld [vmem:[#allocation4 + $0x198] sm:$0xff]
    %v143 = vld [vmem:[#allocation4 + $0x1a0] sm:$0xff]
    %v144 = vld [vmem:[#allocation4 + $0x1a8] sm:$0xff]
    %v145 = vld [vmem:[#allocation4 + $0x1b0] sm:$0xff]
    %v146 = vld [vmem:[#allocation4 + $0x1b8] sm:$0xff]
    %v147 = vld [vmem:[#allocation4 + $0x1c0] sm:$0xff]
    %v148 = vld [vmem:[#allocation4 + $0x1c8] sm:$0xff]
    %v149 = vld [vmem:[#allocation4 + $0x1d0] sm:$0xff]
    %v150 = vld [vmem:[#allocation4 + $0x1d8] sm:$0xff]
    %v151 = vld [vmem:[#allocation4 + $0x1e0] sm:$0xff]
    %v152 = vld [vmem:[#allocation4 + $0x1e8] sm:$0xff]
    %v153 = vld [vmem:[#allocation4 + $0x1f0] sm:$0xff]
    %v154 = vld [vmem:[#allocation4 + $0x1f8] sm:$0xff]
    %v155 = vld [vmem:[#allocation4 + $0x200] sm:$0xff]
    %v156 = vld [vmem:[#allocation4 + $0x208] sm:$0xff]
    %v157 = vld [vmem:[#allocation4 + $0x210] sm:$0xff]
    %v158 = vld [vmem:[#allocation4 + $0x218] sm:$0xff]
    %v159 = vld [vmem:[#allocation4 + $0x220] sm:$0xff]
    %v160 = vld [vmem:[#allocation4 + $0x228] sm:$0xff]
    %v161 = vld [vmem:[#allocation4 + $0x230] sm:$0xff]
    %v162 = vld [vmem:[#allocation4 + $0x238] sm:$0xff]
    %v163 = vld [vmem:[#allocation4 + $0x240] sm:$0xff]
    %v164 = vld [vmem:[#allocation4 + $0x248] sm:$0xff]
    %v165 = vld [vmem:[#allocation4 + $0x250] sm:$0xff]
    %v166 = vld [vmem:[#allocation4 + $0x258] sm:$0xff]
    %v167 = vld [vmem:[#allocation4 + $0x260] sm:$0xff]
    %v168 = vld [vmem:[#allocation4 + $0x268] sm:$0xff]
    %v169 = vld [vmem:[#allocation4 + $0x270] sm:$0xff]
    %v170 = vld [vmem:[#allocation4 + $0x278] sm:$0xff]
    %v171 = vld [vmem:[#allocation4 + $0x280] sm:$0xff]
    %v172 = vld [vmem:[#allocation4 + $0x288] sm:$0xff]
    %v173 = vld [vmem:[#allocation4 + $0x290] sm:$0xff]
    %v174 = vld [vmem:[#allocation4 + $0x298] sm:$0xff]
    %v175 = vld [vmem:[#allocation4 + $0x2a0] sm:$0xff]
    %v176 = vld [vmem:[#allocation4 + $0x2a8] sm:$0xff]
    %v177 = vld [vmem:[#allocation4 + $0x2b0] sm:$0xff]
    %v178 = vld [vmem:[#allocation4 + $0x2b8] sm:$0xff]
    %v179 = vld [vmem:[#allocation4 + $0x2c0] sm:$0xff]
    %v180 = vld [vmem:[#allocation4 + $0x2c8] sm:$0xff]
    %v181 = vld [vmem:[#allocation4 + $0x2d0] sm:$0xff]
    %v182 = vld [vmem:[#allocation4 + $0x2d8] sm:$0xff]
    %v183 = vld [vmem:[#allocation4 + $0x2e0] sm:$0xff]
    %v184 = vld [vmem:[#allocation4 + $0x2e8] sm:$0xff]
    %v185 = vld [vmem:[#allocation4 + $0x2f0] sm:$0xff]
    %v186 = vld [vmem:[#allocation4 + $0x2f8] sm:$0xff]
    %v187 = vld [vmem:[#allocation6] sm:$0x3]
    %v189 = vperm.slane %v187, 0
    %v190 = vperm.slane %v187, 1
    %v289 = vunpack.c.l.b16 %v91
    %v290 = vunpack.c.h.b16 %v91
    %v291 = vunpack.c.l.b16 %v92
    %v292 = vunpack.c.h.b16 %v92
    %v293 = vunpack.c.l.b16 %v93
    %v294 = vunpack.c.h.b16 %v93
    %v295 = vunpack.c.l.b16 %v94
    %v296 = vunpack.c.h.b16 %v94
    %v297 = vunpack.c.l.b16 %v95
    %v298 = vunpack.c.h.b16 %v95
    %v299 = vunpack.c.l.b16 %v96
    %v300 = vunpack.c.h.b16 %v96
    %v301 = vunpack.c.l.b16 %v97
    %v302 = vunpack.c.h.b16 %v97
    %v303 = vunpack.c.l.b16 %v98
    %v304 = vunpack.c.h.b16 %v98
    %v305 = vunpack.c.l.b16 %v99
    %v306 = vunpack.c.h.b16 %v99
    %v307 = vunpack.c.l.b16 %v100
    %v308 = vunpack.c.h.b16 %v100
    %v309 = vunpack.c.l.b16 %v101
    %v310 = vunpack.c.h.b16 %v101
    %v311 = vunpack.c.l.b16 %v102
    %v312 = vunpack.c.h.b16 %v102
    %v313 = vunpack.c.l.b16 %v103
    %v314 = vunpack.c.h.b16 %v103
    %v315 = vunpack.c.l.b16 %v104
    %v316 = vunpack.c.h.b16 %v104
    %v317 = vunpack.c.l.b16 %v105
    %v318 = vunpack.c.h.b16 %v105
    %v319 = vunpack.c.l.b16 %v106
    %v320 = vunpack.c.h.b16 %v106
    %v321 = vunpack.c.l.b16 %v107
    %v322 = vunpack.c.h.b16 %v107
    %v323 = vunpack.c.l.b16 %v108
    %v324 = vunpack.c.h.b16 %v108
    %v325 = vunpack.c.l.b16 %v109
    %v326 = vunpack.c.h.b16 %v109
    %v327 = vunpack.c.l.b16 %v110
    %v328 = vunpack.c.h.b16 %v110
    %v329 = vunpack.c.l.b16 %v111
    %v330 = vunpack.c.h.b16 %v111
    %v331 = vunpack.c.l.b16 %v112
    %v332 = vunpack.c.h.b16 %v112
    %v333 = vunpack.c.l.b16 %v113
    %v334 = vunpack.c.h.b16 %v113
    %v335 = vunpack.c.l.b16 %v114
    %v336 = vunpack.c.h.b16 %v114
    %v337 = vunpack.c.l.b16 %v115
    %v338 = vunpack.c.h.b16 %v115
    %v339 = vunpack.c.l.b16 %v116
    %v340 = vunpack.c.h.b16 %v116
    %v341 = vunpack.c.l.b16 %v117
    %v342 = vunpack.c.h.b16 %v117
    %v343 = vunpack.c.l.b16 %v118
    %v344 = vunpack.c.h.b16 %v118
    %v345 = vunpack.c.l.b16 %v119
    %v346 = vunpack.c.h.b16 %v119
    %v347 = vunpack.c.l.b16 %v120
    %v348 = vunpack.c.h.b16 %v120
    %v349 = vunpack.c.l.b16 %v121
    %v350 = vunpack.c.h.b16 %v121
    %v351 = vunpack.c.l.b16 %v122
    %v352 = vunpack.c.h.b16 %v122
    %v353 = vunpack.c.l.b16 %v123
    %v354 = vunpack.c.h.b16 %v123
    %v355 = vunpack.c.l.b16 %v124
    %v356 = vunpack.c.h.b16 %v124
    %v357 = vunpack.c.l.b16 %v125
    %v358 = vunpack.c.h.b16 %v125
    %v359 = vunpack.c.l.b16 %v126
    %v360 = vunpack.c.h.b16 %v126
    %v361 = vunpack.c.l.b16 %v127
    %v362 = vunpack.c.h.b16 %v127
    %v363 = vunpack.c.l.b16 %v128
    %v364 = vunpack.c.h.b16 %v128
    %v365 = vunpack.c.l.b16 %v129
    %v366 = vunpack.c.h.b16 %v129
    %v367 = vunpack.c.l.b16 %v130
    %v368 = vunpack.c.h.b16 %v130
    %v369 = vunpack.c.l.b16 %v131
    %v370 = vunpack.c.h.b16 %v131
    %v371 = vunpack.c.l.b16 %v132
    %v372 = vunpack.c.h.b16 %v132
    %v373 = vunpack.c.l.b16 %v133
    %v374 = vunpack.c.h.b16 %v133
    %v375 = vunpack.c.l.b16 %v134
    %v376 = vunpack.c.h.b16 %v134
    %v377 = vunpack.c.l.b16 %v135
    %v378 = vunpack.c.h.b16 %v135
    %v379 = vunpack.c.l.b16 %v136
    %v380 = vunpack.c.h.b16 %v136
    %v381 = vunpack.c.l.b16 %v137
    %v382 = vunpack.c.h.b16 %v137
    %v383 = vunpack.c.l.b16 %v138
    %v384 = vunpack.c.h.b16 %v138
    %v385 = vunpack.c.l.b16 %v139
    %v386 = vunpack.c.h.b16 %v139
    %v387 = vunpack.c.l.b16 %v140
    %v388 = vunpack.c.h.b16 %v140
    %v389 = vunpack.c.l.b16 %v141
    %v390 = vunpack.c.h.b16 %v141
    %v391 = vunpack.c.l.b16 %v142
    %v392 = vunpack.c.h.b16 %v142
    %v393 = vunpack.c.l.b16 %v143
    %v394 = vunpack.c.h.b16 %v143
    %v395 = vunpack.c.l.b16 %v144
    %v396 = vunpack.c.h.b16 %v144
    %v397 = vunpack.c.l.b16 %v145
    %v398 = vunpack.c.h.b16 %v145
    %v399 = vunpack.c.l.b16 %v146
    %v400 = vunpack.c.h.b16 %v146
    %v401 = vunpack.c.l.b16 %v147
    %v402 = vunpack.c.h.b16 %v147
    %v403 = vunpack.c.l.b16 %v148
    %v404 = vunpack.c.h.b16 %v148
    %v405 = vunpack.c.l.b16 %v149
    %v406 = vunpack.c.h.b16 %v149
    %v407 = vunpack.c.l.b16 %v150
    %v408 = vunpack.c.h.b16 %v150
    %v409 = vunpack.c.l.b16 %v151
    %v410 = vunpack.c.h.b16 %v151
    %v411 = vunpack.c.l.b16 %v152
    %v412 = vunpack.c.h.b16 %v152
    %v413 = vunpack.c.l.b16 %v153
    %v414 = vunpack.c.h.b16 %v153
    %v415 = vunpack.c.l.b16 %v154
    %v416 = vunpack.c.h.b16 %v154
    %v417 = vunpack.c.l.b16 %v155
    %v418 = vunpack.c.h.b16 %v155
    %v419 = vunpack.c.l.b16 %v156
    %v420 = vunpack.c.h.b16 %v156
    %v421 = vunpack.c.l.b16 %v157
    %v422 = vunpack.c.h.b16 %v157
    %v423 = vunpack.c.l.b16 %v158
    %v424 = vunpack.c.h.b16 %v158
    %v425 = vunpack.c.l.b16 %v159
    %v426 = vunpack.c.h.b16 %v159
    %v427 = vunpack.c.l.b16 %v160
    %v428 = vunpack.c.h.b16 %v160
    %v429 = vunpack.c.l.b16 %v161
    %v430 = vunpack.c.h.b16 %v161
    %v431 = vunpack.c.l.b16 %v162
    %v432 = vunpack.c.h.b16 %v162
    %v433 = vunpack.c.l.b16 %v163
    %v434 = vunpack.c.h.b16 %v163
    %v435 = vunpack.c.l.b16 %v164
    %v436 = vunpack.c.h.b16 %v164
    %v437 = vunpack.c.l.b16 %v165
    %v438 = vunpack.c.h.b16 %v165
    %v439 = vunpack.c.l.b16 %v166
    %v440 = vunpack.c.h.b16 %v166
    %v441 = vunpack.c.l.b16 %v167
    %v442 = vunpack.c.h.b16 %v167
    %v443 = vunpack.c.l.b16 %v168
    %v444 = vunpack.c.h.b16 %v168
    %v445 = vunpack.c.l.b16 %v169
    %v446 = vunpack.c.h.b16 %v169
    %v447 = vunpack.c.l.b16 %v170
    %v448 = vunpack.c.h.b16 %v170
    %v449 = vunpack.c.l.b16 %v171
    %v450 = vunpack.c.h.b16 %v171
    %v451 = vunpack.c.l.b16 %v172
    %v452 = vunpack.c.h.b16 %v172
    %v453 = vunpack.c.l.b16 %v173
    %v454 = vunpack.c.h.b16 %v173
    %v455 = vunpack.c.l.b16 %v174
    %v456 = vunpack.c.h.b16 %v174
    %v457 = vunpack.c.l.b16 %v175
    %v458 = vunpack.c.h.b16 %v175
    %v459 = vunpack.c.l.b16 %v176
    %v460 = vunpack.c.h.b16 %v176
    %v461 = vunpack.c.l.b16 %v177
    %v462 = vunpack.c.h.b16 %v177
    %v463 = vunpack.c.l.b16 %v178
    %v464 = vunpack.c.h.b16 %v178
    %v465 = vunpack.c.l.b16 %v179
    %v466 = vunpack.c.h.b16 %v179
    %v467 = vunpack.c.l.b16 %v180
    %v468 = vunpack.c.h.b16 %v180
    %v469 = vunpack.c.l.b16 %v181
    %v470 = vunpack.c.h.b16 %v181
    %v471 = vunpack.c.l.b16 %v182
    %v472 = vunpack.c.h.b16 %v182
    %v473 = vunpack.c.l.b16 %v183
    %v474 = vunpack.c.h.b16 %v183
    %v475 = vunpack.c.l.b16 %v184
    %v476 = vunpack.c.h.b16 %v184
    %v477 = vunpack.c.l.b16 %v185
    %v478 = vunpack.c.h.b16 %v185
    %v479 = vunpack.c.l.b16 %v186
    %v480 = vunpack.c.h.b16 %v186
    %v481 = vpack.c.b16 %v291, %v289
    %v482 = vpack.c.b16 %v292, %v290
    %v483 = vpack.c.b16 %v295, %v293
    %v484 = vpack.c.b16 %v296, %v294
    %v485 = vpack.c.b16 %v299, %v297
    %v486 = vpack.c.b16 %v300, %v298
    %v487 = vpack.c.b16 %v303, %v301
    %v488 = vpack.c.b16 %v304, %v302
    %v489 = vpack.c.b16 %v307, %v305
    %v490 = vpack.c.b16 %v308, %v306
    %v491 = vpack.c.b16 %v311, %v309
    %v492 = vpack.c.b16 %v312, %v310
    %v493 = vpack.c.b16 %v315, %v313
    %v494 = vpack.c.b16 %v316, %v314
    %v495 = vpack.c.b16 %v319, %v317
    %v496 = vpack.c.b16 %v320, %v318
    %v497 = vpack.c.b16 %v323, %v321
    %v498 = vpack.c.b16 %v324, %v322
    %v499 = vpack.c.b16 %v327, %v325
    %v500 = vpack.c.b16 %v328, %v326
    %v501 = vpack.c.b16 %v331, %v329
    %v502 = vpack.c.b16 %v332, %v330
    %v503 = vpack.c.b16 %v335, %v333
    %v504 = vpack.c.b16 %v336, %v334
    %v505 = vpack.c.b16 %v339, %v337
    %v506 = vpack.c.b16 %v340, %v338
    %v507 = vpack.c.b16 %v343, %v341
    %v508 = vpack.c.b16 %v344, %v342
    %v509 = vpack.c.b16 %v347, %v345
    %v510 = vpack.c.b16 %v348, %v346
    %v511 = vpack.c.b16 %v351, %v349
    %v512 = vpack.c.b16 %v352, %v350
    %v513 = vpack.c.b16 %v355, %v353
    %v514 = vpack.c.b16 %v356, %v354
    %v515 = vpack.c.b16 %v359, %v357
    %v516 = vpack.c.b16 %v360, %v358
    %v517 = vpack.c.b16 %v363, %v361
    %v518 = vpack.c.b16 %v364, %v362
    %v519 = vpack.c.b16 %v367, %v365
    %v520 = vpack.c.b16 %v368, %v366
    %v521 = vpack.c.b16 %v371, %v369
    %v522 = vpack.c.b16 %v372, %v370
    %v523 = vpack.c.b16 %v375, %v373
    %v524 = vpack.c.b16 %v376, %v374
    %v525 = vpack.c.b16 %v379, %v377
    %v526 = vpack.c.b16 %v380, %v378
    %v527 = vpack.c.b16 %v383, %v381
    %v528 = vpack.c.b16 %v384, %v382
    %v529 = vpack.c.b16 %v387, %v385
    %v530 = vpack.c.b16 %v388, %v386
    %v531 = vpack.c.b16 %v391, %v389
    %v532 = vpack.c.b16 %v392, %v390
    %v533 = vpack.c.b16 %v395, %v393
    %v534 = vpack.c.b16 %v396, %v394
    %v535 = vpack.c.b16 %v399, %v397
    %v536 = vpack.c.b16 %v400, %v398
    %v537 = vpack.c.b16 %v403, %v401
    %v538 = vpack.c.b16 %v404, %v402
    %v539 = vpack.c.b16 %v407, %v405
    %v540 = vpack.c.b16 %v408, %v406
    %v541 = vpack.c.b16 %v411, %v409
    %v542 = vpack.c.b16 %v412, %v410
    %v543 = vpack.c.b16 %v415, %v413
    %v544 = vpack.c.b16 %v416, %v414
    %v545 = vpack.c.b16 %v419, %v417
    %v546 = vpack.c.b16 %v420, %v418
    %v547 = vpack.c.b16 %v423, %v421
    %v548 = vpack.c.b16 %v424, %v422
    %v549 = vpack.c.b16 %v427, %v425
    %v550 = vpack.c.b16 %v428, %v426
    %v551 = vpack.c.b16 %v431, %v429
    %v552 = vpack.c.b16 %v432, %v430
    %v553 = vpack.c.b16 %v435, %v433
    %v554 = vpack.c.b16 %v436, %v434
    %v555 = vpack.c.b16 %v439, %v437
    %v556 = vpack.c.b16 %v440, %v438
    %v557 = vpack.c.b16 %v443, %v441
    %v558 = vpack.c.b16 %v444, %v442
    %v559 = vpack.c.b16 %v447, %v445
    %v560 = vpack.c.b16 %v448, %v446
    %v561 = vpack.c.b16 %v451, %v449
    %v562 = vpack.c.b16 %v452, %v450
    %v563 = vpack.c.b16 %v455, %v453
    %v564 = vpack.c.b16 %v456, %v454
    %v565 = vpack.c.b16 %v459, %v457
    %v566 = vpack.c.b16 %v460, %v458
    %v567 = vpack.c.b16 %v463, %v461
    %v568 = vpack.c.b16 %v464, %v462
    %v569 = vpack.c.b16 %v467, %v465
    %v570 = vpack.c.b16 %v468, %v466
    %v571 = vpack.c.b16 %v471, %v469
    %v572 = vpack.c.b16 %v472, %v470
    %v573 = vpack.c.b16 %v475, %v473
    %v574 = vpack.c.b16 %v476, %v474
    %v575 = vpack.c.b16 %v479, %v477
    %v576 = vpack.c.b16 %v480, %v478
    %673 = vmatpush.bf16.msra.mxu0 %v495
    %674 = vmatpush.bf16.msra.mxu0 %v493
    %675 = vmatpush.bf16.msra.mxu0 %v491
    %676 = vmatpush.bf16.msra.mxu0 %v489
    %677 = vmatpush.bf16.msra.mxu0 %v487
    %678 = vmatpush.bf16.msra.mxu0 %v485
    %679 = vmatpush.bf16.msra.mxu0 %v483
    %680 = vmatpush.bf16.msra.mxu0 %v481
    %681 = vmatmul.bf16.gmra.mxu0 %v85
    %v682 = vpop.f32.mrf.mxu0
    %v683 = vadd.f32 %v189, %v682
    %v684 = vpop.f32.mrf.mxu0
    %685 = vdwg.mxu0
    %686 = vmatpush.bf16.msra.mxu0 %v511
    %687 = vmatpush.bf16.msra.mxu0 %v509
    %688 = vmatpush.bf16.msra.mxu0 %v507
    %689 = vmatpush.bf16.msra.mxu0 %v505
    %690 = vmatpush.bf16.msra.mxu0 %v503
    %691 = vmatpush.bf16.msra.mxu0 %v501
    %692 = vmatpush.bf16.msra.mxu0 %v499
    %693 = vmatpush.bf16.msra.mxu0 %v497
    %694 = vmatmul.bf16.gmra.mxu0 %v86
    %v695 = vpop.f32.mrf.mxu0
    %v696 = vadd.f32 %v683, %v695
    %v697 = vpop.f32.mrf.mxu0
    %698 = vdwg.mxu0
    %699 = vmatpush.bf16.msra.mxu0 %v527
    %700 = vmatpush.bf16.msra.mxu0 %v525
    %701 = vmatpush.bf16.msra.mxu0 %v523
    %702 = vmatpush.bf16.msra.mxu0 %v521
    %703 = vmatpush.bf16.msra.mxu0 %v519
    %704 = vmatpush.bf16.msra.mxu0 %v517
    %705 = vmatpush.bf16.msra.mxu0 %v515
    %706 = vmatpush.bf16.msra.mxu0 %v513
    %707 = vmatmul.bf16.gmra.mxu0 %v87
    %v708 = vpop.f32.mrf.mxu0
    %v709 = vadd.f32 %v696, %v708
    %v710 = vpop.f32.mrf.mxu0
    %711 = vdwg.mxu0
    %712 = vmatpush.bf16.msra.mxu0 %v543
    %713 = vmatpush.bf16.msra.mxu0 %v541
    %714 = vmatpush.bf16.msra.mxu0 %v539
    %715 = vmatpush.bf16.msra.mxu0 %v537
    %716 = vmatpush.bf16.msra.mxu0 %v535
    %717 = vmatpush.bf16.msra.mxu0 %v533
    %718 = vmatpush.bf16.msra.mxu0 %v531
    %719 = vmatpush.bf16.msra.mxu0 %v529
    %720 = vmatmul.bf16.gmra.mxu0 %v88
    %v721 = vpop.f32.mrf.mxu0
    %v722 = vadd.f32 %v709, %v721
    %v723 = vpop.f32.mrf.mxu0
    %724 = vdwg.mxu0
    %725 = vmatpush.bf16.msra.mxu0 %v559
    %726 = vmatpush.bf16.msra.mxu0 %v557
    %727 = vmatpush.bf16.msra.mxu0 %v555
    %728 = vmatpush.bf16.msra.mxu0 %v553
    %729 = vmatpush.bf16.msra.mxu0 %v551
    %730 = vmatpush.bf16.msra.mxu0 %v549
    %731 = vmatpush.bf16.msra.mxu0 %v547
    %732 = vmatpush.bf16.msra.mxu0 %v545
    %733 = vmatmul.bf16.gmra.mxu0 %v89
    %v734 = vpop.f32.mrf.mxu0
    %v735 = vadd.f32 %v722, %v734
    %v736 = vpop.f32.mrf.mxu0
    %737 = vdwg.mxu0
    %738 = vmatpush.bf16.msra.mxu0 %v575
    %739 = vmatpush.bf16.msra.mxu0 %v573
    %740 = vmatpush.bf16.msra.mxu0 %v571
    %741 = vmatpush.bf16.msra.mxu0 %v569
    %742 = vmatpush.bf16.msra.mxu0 %v567
    %743 = vmatpush.bf16.msra.mxu0 %v565
    %744 = vmatpush.bf16.msra.mxu0 %v563
    %745 = vmatpush.bf16.msra.mxu0 %v561
    %746 = vmatmul.bf16.gmra.mxu0 %v90
    %v747 = vpop.f32.mrf.mxu0
    %v748 = vadd.f32 %v735, %v747
    %v749 = vpop.f32.mrf.mxu0
    %750 = vdwg.mxu0
    %751 = vmatpush.bf16.msra.mxu0 %v496
    %752 = vmatpush.bf16.msra.mxu0 %v494
    %753 = vmatpush.bf16.msra.mxu0 %v492
    %754 = vmatpush.bf16.msra.mxu0 %v490
    %755 = vmatpush.bf16.msra.mxu0 %v488
    %756 = vmatpush.bf16.msra.mxu0 %v486
    %757 = vmatpush.bf16.msra.mxu0 %v484
    %758 = vmatpush.bf16.msra.mxu0 %v482
    %759 = vmatmul.bf16.gmra.mxu0 %v85
    %v760 = vpop.f32.mrf.mxu0
    %v761 = vadd.f32 %v190, %v760
    %v762 = vpop.f32.mrf.mxu0
    %763 = vdwg.mxu0
    %764 = vmatpush.bf16.msra.mxu0 %v512
    %765 = vmatpush.bf16.msra.mxu0 %v510
    %766 = vmatpush.bf16.msra.mxu0 %v508
    %767 = vmatpush.bf16.msra.mxu0 %v506
    %768 = vmatpush.bf16.msra.mxu0 %v504
    %769 = vmatpush.bf16.msra.mxu0 %v502
    %770 = vmatpush.bf16.msra.mxu0 %v500
    %771 = vmatpush.bf16.msra.mxu0 %v498
    %772 = vmatmul.bf16.gmra.mxu0 %v86
    %v773 = vpop.f32.mrf.mxu0
    %v774 = vadd.f32 %v761, %v773
    %v775 = vpop.f32.mrf.mxu0
    %776 = vdwg.mxu0
    %777 = vmatpush.bf16.msra.mxu0 %v528
    %778 = vmatpush.bf16.msra.mxu0 %v526
    %779 = vmatpush.bf16.msra.mxu0 %v524
    %780 = vmatpush.bf16.msra.mxu0 %v522
    %781 = vmatpush.bf16.msra.mxu0 %v520
    %782 = vmatpush.bf16.msra.mxu0 %v518
    %783 = vmatpush.bf16.msra.mxu0 %v516
    %784 = vmatpush.bf16.msra.mxu0 %v514
    %785 = vmatmul.bf16.gmra.mxu0 %v87
    %v786 = vpop.f32.mrf.mxu0
    %v787 = vadd.f32 %v774, %v786
    %v788 = vpop.f32.mrf.mxu0
    %789 = vdwg.mxu0
    %790 = vmatpush.bf16.msra.mxu0 %v544
    %791 = vmatpush.bf16.msra.mxu0 %v542
    %792 = vmatpush.bf16.msra.mxu0 %v540
    %793 = vmatpush.bf16.msra.mxu0 %v538
    %794 = vmatpush.bf16.msra.mxu0 %v536
    %795 = vmatpush.bf16.msra.mxu0 %v534
    %796 = vmatpush.bf16.msra.mxu0 %v532
    %797 = vmatpush.bf16.msra.mxu0 %v530
    %798 = vmatmul.bf16.gmra.mxu0 %v88
    %v799 = vpop.f32.mrf.mxu0
    %v800 = vadd.f32 %v787, %v799
    %v801 = vpop.f32.mrf.mxu0
    %802 = vdwg.mxu0
    %803 = vmatpush.bf16.msra.mxu0 %v560
    %804 = vmatpush.bf16.msra.mxu0 %v558
    %805 = vmatpush.bf16.msra.mxu0 %v556
    %806 = vmatpush.bf16.msra.mxu0 %v554
    %807 = vmatpush.bf16.msra.mxu0 %v552
    %808 = vmatpush.bf16.msra.mxu0 %v550
    %809 = vmatpush.bf16.msra.mxu0 %v548
    %810 = vmatpush.bf16.msra.mxu0 %v546
    %811 = vmatmul.bf16.gmra.mxu0 %v89
    %v812 = vpop.f32.mrf.mxu0
    %v813 = vadd.f32 %v800, %v812
    %v814 = vpop.f32.mrf.mxu0
    %815 = vdwg.mxu0
    %816 = vmatpush.bf16.msra.mxu0 %v576
    %817 = vmatpush.bf16.msra.mxu0 %v574
    %818 = vmatpush.bf16.msra.mxu0 %v572
    %819 = vmatpush.bf16.msra.mxu0 %v570
    %820 = vmatpush.bf16.msra.mxu0 %v568
    %821 = vmatpush.bf16.msra.mxu0 %v566
    %822 = vmatpush.bf16.msra.mxu0 %v564
    %823 = vmatpush.bf16.msra.mxu0 %v562
    %824 = vmatmul.bf16.gmra.mxu0 %v90
    %v825 = vpop.f32.mrf.mxu0
    %v826 = vadd.f32 %v813, %v825
    %v827 = vpop.f32.mrf.mxu0
    %828 = vdwg.mxu0
    %v829 = vmax.f32 %v748, 0.0
    %v830 = vmax.f32 %v826, 0.0
    %v831 = vpack.c.bf16 %v829, %v829
    %v832 = vpack.c.bf16 %v830, %v830
    %v833 = vld [vmem:[#allocation7] sm:$0xf]
    %v834 = vld [vmem:[#allocation7 + $0x4] sm:$0xf]
    %v835 = vld [vmem:[#allocation7 + $0x8] sm:$0xf]
    %v836 = vld [vmem:[#allocation7 + $0xc] sm:$0xf]
    %v837 = vld [vmem:[#allocation7 + $0x10] sm:$0xf]
    %v838 = vld [vmem:[#allocation7 + $0x14] sm:$0xf]
    %v839 = vld [vmem:[#allocation7 + $0x18] sm:$0xf]
    %v840 = vld [vmem:[#allocation7 + $0x1c] sm:$0xf]
    %v841 = vld [vmem:[#allocation7 + $0x20] sm:$0xf]
    %v842 = vld [vmem:[#allocation7 + $0x24] sm:$0xf]
    %v843 = vld [vmem:[#allocation7 + $0x28] sm:$0xf]
    %v844 = vld [vmem:[#allocation7 + $0x2c] sm:$0xf]
    %v845 = vld [vmem:[#allocation7 + $0x30] sm:$0xf]
    %v846 = vld [vmem:[#allocation7 + $0x34] sm:$0xf]
    %v847 = vld [vmem:[#allocation7 + $0x38] sm:$0xf]
    %v848 = vld [vmem:[#allocation7 + $0x3c] sm:$0xf]
    %v849 = vld [vmem:[#allocation7 + $0x40] sm:$0xf]
    %v850 = vld [vmem:[#allocation7 + $0x44] sm:$0xf]
    %v851 = vld [vmem:[#allocation7 + $0x48] sm:$0xf]
    %v852 = vld [vmem:[#allocation7 + $0x4c] sm:$0xf]
    %v853 = vld [vmem:[#allocation7 + $0x50] sm:$0xf]
    %v854 = vld [vmem:[#allocation7 + $0x54] sm:$0xf]
    %v855 = vld [vmem:[#allocation7 + $0x58] sm:$0xf]
    %v856 = vld [vmem:[#allocation7 + $0x5c] sm:$0xf]
    %v857 = vld [vmem:[#allocation7 + $0x60] sm:$0xf]
    %v858 = vld [vmem:[#allocation7 + $0x64] sm:$0xf]
    %v859 = vld [vmem:[#allocation7 + $0x68] sm:$0xf]
    %v860 = vld [vmem:[#allocation7 + $0x6c] sm:$0xf]
    %v861 = vld [vmem:[#allocation7 + $0x70] sm:$0xf]
    %v862 = vld [vmem:[#allocation7 + $0x74] sm:$0xf]
    %v863 = vld [vmem:[#allocation7 + $0x78] sm:$0xf]
    %v864 = vld [vmem:[#allocation7 + $0x7c] sm:$0xf]
    %v865 = vld [vmem:[%s4] sm:$0x1]
    %v867 = vperm.slane %v865, 0
    %v901 = vunpack.c.l.b16 %v833
    %v902 = vunpack.c.l.b16 %v834
    %v903 = vunpack.c.l.b16 %v835
    %v904 = vunpack.c.l.b16 %v836
    %v905 = vunpack.c.l.b16 %v837
    %v906 = vunpack.c.l.b16 %v838
    %v907 = vunpack.c.l.b16 %v839
    %v908 = vunpack.c.l.b16 %v840
    %v909 = vunpack.c.l.b16 %v841
    %v910 = vunpack.c.l.b16 %v842
    %v911 = vunpack.c.l.b16 %v843
    %v912 = vunpack.c.l.b16 %v844
    %v913 = vunpack.c.l.b16 %v845
    %v914 = vunpack.c.l.b16 %v846
    %v915 = vunpack.c.l.b16 %v847
    %v916 = vunpack.c.l.b16 %v848
    %v917 = vunpack.c.l.b16 %v849
    %v918 = vunpack.c.l.b16 %v850
    %v919 = vunpack.c.l.b16 %v851
    %v920 = vunpack.c.l.b16 %v852
    %v921 = vunpack.c.l.b16 %v853
    %v922 = vunpack.c.l.b16 %v854
    %v923 = vunpack.c.l.b16 %v855
    %v924 = vunpack.c.l.b16 %v856
    %v925 = vunpack.c.l.b16 %v857
    %v926 = vunpack.c.l.b16 %v858
    %v927 = vunpack.c.l.b16 %v859
    %v928 = vunpack.c.l.b16 %v860
    %v929 = vunpack.c.l.b16 %v861
    %v930 = vunpack.c.l.b16 %v862
    %v931 = vunpack.c.l.b16 %v863
    %v932 = vunpack.c.l.b16 %v864
    %v933 = vpack.c.b16 %v902, %v901
    %v934 = vpack.c.b16 %v904, %v903
    %v935 = vpack.c.b16 %v906, %v905
    %v936 = vpack.c.b16 %v908, %v907
    %v937 = vpack.c.b16 %v910, %v909
    %v938 = vpack.c.b16 %v912, %v911
    %v939 = vpack.c.b16 %v914, %v913
    %v940 = vpack.c.b16 %v916, %v915
    %v941 = vpack.c.b16 %v918, %v917
    %v942 = vpack.c.b16 %v920, %v919
    %v943 = vpack.c.b16 %v922, %v921
    %v944 = vpack.c.b16 %v924, %v923
    %v945 = vpack.c.b16 %v926, %v925
    %v946 = vpack.c.b16 %v928, %v927
    %v947 = vpack.c.b16 %v930, %v929
    %v948 = vpack.c.b16 %v932, %v931
    %965 = vmatpush.bf16.msra.mxu0 %v940
    %966 = vmatpush.bf16.msra.mxu0 %v939
    %967 = vmatpush.bf16.msra.mxu0 %v938
    %968 = vmatpush.bf16.msra.mxu0 %v937
    %969 = vmatpush.bf16.msra.mxu0 %v936
    %970 = vmatpush.bf16.msra.mxu0 %v935
    %971 = vmatpush.bf16.msra.mxu0 %v934
    %972 = vmatpush.bf16.msra.mxu0 %v933
    %973 = vmatmul.bf16.gmra.mxu0 %v831
    %v974 = vpop.f32.mrf.mxu0
    %v975 = vadd.f32 %v867, %v974
    %v976 = vpop.f32.mrf.mxu0
    %977 = vdwg.mxu0
    %978 = vmatpush.bf16.msra.mxu0 %v948
    %979 = vmatpush.bf16.msra.mxu0 %v947
    %980 = vmatpush.bf16.msra.mxu0 %v946
    %981 = vmatpush.bf16.msra.mxu0 %v945
    %982 = vmatpush.bf16.msra.mxu0 %v944
    %983 = vmatpush.bf16.msra.mxu0 %v943
    %984 = vmatpush.bf16.msra.mxu0 %v942
    %985 = vmatpush.bf16.msra.mxu0 %v941
    %986 = vmatmul.bf16.gmra.mxu0 %v832
    %v987 = vpop.f32.mrf.mxu0
    %v988 = vadd.f32 %v975, %v987
    %v989 = vpop.f32.mrf.mxu0
    %990 = vdwg.mxu0
    %991 = vst [vmem:[%s5] sm:$0xff] %v988
    // Predicated region
    $region38: #{mlp_text_forward.1} parent=1 // pred_check
      _
    $region39: #{mlp_text_forward.1} parent=1 // pred_check_branch
      %993 = sbr.rel (0) target = $region41
    $region40: #{mlp_text_forward.1} parent=1 // pred_region
      _
    $region41: #{mlp_text_forward.1} parent=1 // pred_fallthru
      _
    // Predicated region
    $region42: #{mlp_text_forward.1} parent=1 // pred_check
      _
    $region43: #{mlp_text_forward.1} parent=1 // pred_check_branch
      %995 = sbr.rel (0) target = $region45
    $region44: #{mlp_text_forward.1} parent=1 // pred_region
      _
    $region45: #{mlp_text_forward.1} parent=1 // pred_fallthru
      _
    %996 = vsyncpa [#allocation3], 1
    %997 = vsyncpa [#allocation5], 1
    %998 = vsyncpa [#allocation8], 1

</llo_original>
